<compile_context>
chip_gen: v5e
topology: v5e:2x2
jax: 0.10.0
libtpu: 0.0.40
codegen_flags: <defaults>
</compile_context>

<pallas_src>
import functools

import jax
import jax.numpy as jnp
from jax.experimental import pallas as pl
from jax.experimental.pallas import tpu as pltpu


def _cdiv(a, b):
    return (a + b - 1) // b


def _round_up(x, m):
    return _cdiv(x, m) * m


def _pick_tm(M, tm_max=1024):
    """Row tile for the GEMM.

    - M <= 256: one full-extent block (full-dim blocks are always layout-legal).
    - otherwise: >= 4 tiles when M permits (>= 2 grid steps per v7x TensorCore
      so the BlockSpec double-buffering actually overlaps DMA with compute;
      v5e/v6e have one core and simply get more overlap), capped at tm_max
      (large tiles amortize the ~0.35us per-step overhead)."""
    if M <= 256:
        return M
    return max(128, min(tm_max, _round_up(_cdiv(M, 4), 128)))


# ----------------------------------------------------------------------------
# Fused Pallas GEMM kernel:  out = maybe_relu(A @ W' + shift')
#   A: (tm, K) bf16, W': (K, N) bf16 (BN scale pre-folded),
#   shift': (1, N) f32 (= bias*scale + shift), accumulation in f32 on the MXU.
# Full-K / full-N blocks: no K grid axis, no accumulator scratch.
# ----------------------------------------------------------------------------
def _gemm_epilogue_kernel(a_ref, w_ref, shift_ref, o_ref, *, relu):
    acc = jnp.dot(a_ref[...], w_ref[...], preferred_element_type=jnp.float32)
    z = acc + shift_ref[...]
    if relu:
        z = jnp.maximum(z, 0.0)
    o_ref[...] = z.astype(o_ref.dtype)


def fused_matmul(a, w_t, bias, scale, shift, *, relu, out_dtype=jnp.float32,
                 tm_max=1024):
    """Computes maybe_relu((a @ w_t + bias) * scale + shift).

    a: (M, K); w_t: (K, N); bias/scale/shift: (N,).  The scale is folded into
    w_t and (bias, shift) into a single shift vector before launching the
    kernel; operands are cast to bf16 (f32 MXU accumulation inside)."""
    M, K = a.shape
    K2, N = w_t.shape
    assert K == K2

    a = a.astype(jnp.bfloat16)
    scale = scale.astype(jnp.float32)
    w_f = (w_t.astype(jnp.float32) * scale[None, :]).astype(jnp.bfloat16)
    shift_f = (bias.astype(jnp.float32) * scale
               + shift.astype(jnp.float32)).reshape(1, N)

    tm = _pick_tm(M, tm_max)
    grid = (pl.cdiv(M, tm),)   # ragged last tile handled by Pallas; no jnp.pad of A

    # Double-buffered A/out tiles + (small) weights/shift, with headroom; capped
    # at 48 MiB so the setting is safe on v7x's 64 MiB physical VMEM as well as
    # v5e/v6e's 128 MiB (the actual need here is only a few MiB).
    vmem_bytes = 2 * (tm * K * 2) + 2 * (K * N * 2) + 2 * (tm * N * 4) + 4 * N
    vmem_limit = int(min(max(6 * vmem_bytes, 16 * 1024 * 1024), 48 * 1024 * 1024))

    return pl.pallas_call(
        functools.partial(_gemm_epilogue_kernel, relu=relu),
        out_shape=jax.ShapeDtypeStruct((M, N), out_dtype),
        grid=grid,
        in_specs=[
            pl.BlockSpec((tm, K), lambda i: (i, 0)),   # A tile, full K
            pl.BlockSpec((K, N), lambda i: (0, 0)),    # folded weights (constant block -> no re-fetch)
            pl.BlockSpec((1, N), lambda i: (0, 0)),    # folded shift   (constant block -> no re-fetch)
        ],
        out_specs=pl.BlockSpec((tm, N), lambda i: (i, 0)),  # contiguous HBM slab (N = full minor dim)
        compiler_params=pltpu.CompilerParams(
            dimension_semantics=("parallel",),
            vmem_limit_bytes=vmem_limit),
    )(a, w_f, shift_f)


# ----------------------------------------------------------------------------
# Plain-JAX glue: BN(eval) folding, deformable bilinear sampling -> GEMM columns
# ----------------------------------------------------------------------------
def bn_eval_scale_shift(num_ch, eps=1e-5):
    gamma = jnp.ones((num_ch,), jnp.float32)
    beta = jnp.zeros((num_ch,), jnp.float32)
    mean = jnp.zeros((num_ch,), jnp.float32)
    var = jnp.ones((num_ch,), jnp.float32)
    scale = gamma / jnp.sqrt(var + eps)
    shift = beta - mean * scale
    return scale, shift


def deform_columns(x_cl, offsets_cl, *, k, stride, pad, dil):
    """Deformable bilinear sampling -> GEMM columns (bf16), emitted directly in
    the GEMM's A layout (no transpose of the sampled tensor).

    x_cl:       (B, T, H, W, C) f32  (channel-last input frames)
    offsets_cl: (B, T, Ho, Wo, 2*k*k) f32, channel-last, interleaved per tap
                [dy_0, dx_0, dy_1, dx_1, ...] (torchvision deform_conv2d order)
    Returns cols: (B*T*Ho*Wo, k*k*C) bf16 with K ordered (tap, c), plus Ho, Wo.
    """
    B, T, H, W, C = x_cl.shape
    sh, sw = stride
    Ho = (H + 2 * pad - dil * (k - 1) - 1) // sh + 1
    Wo = (W + 2 * pad - dil * (k - 1) - 1) // sw + 1
    kk = k * k
    assert offsets_cl.shape == (B, T, Ho, Wo, 2 * kk), offsets_cl.shape

    off = offsets_cl.astype(jnp.float32).reshape(B, T, Ho, Wo, kk, 2)
    off_y = off[..., 0]                                   # (B,T,Ho,Wo,kk)
    off_x = off[..., 1]

    ki = jnp.arange(k)
    tap_i = jnp.repeat(ki, k)                             # kernel row per tap
    tap_j = jnp.tile(ki, k)                               # kernel col per tap
    ho = jnp.arange(Ho)
    wo = jnp.arange(Wo)
    base_y = (ho[:, None, None] * sh - pad + tap_i[None, None, :] * dil
              ).astype(jnp.float32)                       # (Ho, 1, kk)
    base_x = (wo[None, :, None] * sw - pad + tap_j[None, None, :] * dil
              ).astype(jnp.float32)                       # (1, Wo, kk)
    p_y = base_y[None, None] + off_y                      # (B,T,Ho,Wo,kk)
    p_x = base_x[None, None] + off_x

    y0 = jnp.floor(p_y)
    x0 = jnp.floor(p_x)
    ly = p_y - y0
    lx = p_x - x0
    y0i = y0.astype(jnp.int32)
    x0i = x0.astype(jnp.int32)
    y1i = y0i + 1
    x1i = x0i + 1

    def valid(y, xx):
        return ((y >= 0) & (y < H) & (xx >= 0) & (xx < W)).astype(jnp.float32)

    w00 = (1 - ly) * (1 - lx) * valid(y0i, x0i)
    w01 = (1 - ly) * lx * valid(y0i, x1i)
    w10 = ly * (1 - lx) * valid(y1i, x0i)
    w11 = ly * lx * valid(y1i, x1i)

    P = Ho * Wo * kk
    x_flat = x_cl.reshape(B, T, H * W, C)                 # f32 gather source

    def flat_idx(y, xx):
        yc = jnp.clip(y, 0, H - 1)
        xc = jnp.clip(xx, 0, W - 1)
        return (yc * W + xc).reshape(B, T, P, 1)          # (B,T,P,1) int32

    def gather(idx):
        return jnp.take_along_axis(x_flat, idx, axis=2, mode="clip")  # (B,T,P,C)

    def bw(w):
        return w.reshape(B, T, P, 1)

    cols = (bw(w00) * gather(flat_idx(y0i, x0i))
            + bw(w01) * gather(flat_idx(y0i, x1i))
            + bw(w10) * gather(flat_idx(y1i, x0i))
            + bw(w11) * gather(flat_idx(y1i, x1i)))
    # (B, T, Ho*Wo*kk, C) is already laid out as (B, T, Ho, Wo, kk, C):
    # rows = output pixels (b,t,ho,wo), columns = (tap, c) -> the GEMM A matrix.
    return cols.reshape(B * T * Ho * Wo, kk * C).astype(jnp.bfloat16), Ho, Wo


# ----------------------------------------------------------------------------
# Full DeformConv3d forward
# ----------------------------------------------------------------------------
def deform_conv3d_forward(x, params, *, k=3, pad=1, dil=1, stride=(1, 1, 1)):
    B, C, T, H, W = x.shape
    st, sh, sw = stride
    # The reference torch module loops over every input frame t in range(T),
    # so only temporal stride 1 is well-defined; spatial stride is supported.
    assert st == 1, "temporal stride must be 1 (matches the reference module)"

    # Single channel-last view, shared by the offset branch and the sampler.
    x_cl = x.transpose(0, 2, 3, 4, 1)                     # (B,T,H,W,C) f32
    x_bf = x_cl.astype(jnp.bfloat16)

    # offset branch #1: Conv3d(C, 64, 3x3x3, pad 1, stride) + BN(eval) + ReLU.
    # XLA native conv (MXU-tiled) -- no 27x im2col materialization in HBM.
    w1 = params["w1"].transpose(2, 3, 4, 1, 0).astype(jnp.bfloat16)   # (3,3,3,C,64)
    h1 = jax.lax.conv_general_dilated(
        x_bf, w1, window_strides=(st, sh, sw),
        padding=((1, 1), (1, 1), (1, 1)),
        dimension_numbers=("NDHWC", "DHWIO", "NDHWC"),
        preferred_element_type=jnp.float32)
    s1, t1 = bn_eval_scale_shift(64)
    h1 = jnp.maximum((h1 + params["b1"]) * s1 + t1, 0.0)  # (B,T1,Ho,Wo,64)
    _, T1, Ho, Wo, _ = h1.shape

    # offset branch #2: Conv3d(64, 2*k*k, (1,k,k), pad (0,pad,pad)), no act.
    # Output stays channel-last -- consumed directly by the sampler.
    w2 = params["w2"].transpose(2, 3, 4, 1, 0).astype(jnp.bfloat16)   # (1,k,k,64,2kk)
    offsets = jax.lax.conv_general_dilated(
        h1.astype(jnp.bfloat16), w2, window_strides=(1, 1, 1),
        padding=((0, 0), (pad, pad), (pad, pad)),
        dimension_numbers=("NDHWC", "DHWIO", "NDHWC"),
        preferred_element_type=jnp.float32)
    offsets = offsets + params["b2"]                      # (B,T1,Ho,Wo,2kk)

    # deformable conv2d per frame: bilinear sample -> fused Pallas GEMM
    # (+ bias + BN(eval) + ReLU epilogue).
    cols_d, Ho2, Wo2 = deform_columns(x_cl, offsets, k=k, stride=(sh, sw),
                                      pad=pad, dil=dil)
    assert (Ho2, Wo2) == (O := (Ho, Wo))[0:2], "offset grid / deform output grid mismatch"
    OC = params["weight"].shape[0]
    # Re-order the weight once so its K axis is (tap, c), matching the columns.
    wd = params["weight"].transpose(0, 2, 3, 1).reshape(OC, k * k * C).T  # (kk*C, OC)
    sd, td = bn_eval_scale_shift(OC)
    out = fused_matmul(cols_d, wd, params["bias"], sd, td,
                       relu=True, out_dtype=jnp.float32)
    out = out.reshape(B, T1, Ho, Wo, OC).transpose(0, 4, 1, 2, 3)  # (B,OC,T,Ho,Wo)
    return out


def init_params(key, in_channels, out_channels, k=3):
    ks = jax.random.split(key, 5)
    fan1 = in_channels * 27
    lim1 = (1.0 / fan1) ** 0.5
    w1 = jax.random.uniform(ks[0], (64, in_channels, 3, 3, 3), jnp.float32, -lim1, lim1)
    b1 = jax.random.uniform(ks[1], (64,), jnp.float32, -lim1, lim1)

    n_off = 2 * k * k
    fan2 = 64 * k * k
    lim2 = (1.0 / fan2) ** 0.5
    w2 = jax.random.uniform(ks[2], (n_off, 64, 1, k, k), jnp.float32, -lim2, lim2)
    b2 = jax.random.uniform(ks[3], (n_off,), jnp.float32, -lim2, lim2)

    fan_d = in_channels * k * k
    bound = (6.0 / fan_d) ** 0.5                          # kaiming_uniform_, relu gain
    wd = jax.random.uniform(ks[4], (out_channels, in_channels, k, k), jnp.float32,
                            -bound, bound)
    bd = jnp.zeros((out_channels,), jnp.float32)          # nn.init.zeros_(bias)
    return dict(w1=w1, b1=b1, w2=w2, b2=b2, weight=wd, bias=bd)


if __name__ == "__main__":
    key = jax.random.PRNGKey(0)
    kx, kp = jax.random.split(key)
    B, C, T, H, W = 2, 4, 4, 8, 8
    OUT_CH = 8

    x = jax.random.normal(kx, (B, C, T, H, W), jnp.float32)
    params = init_params(kp, C, OUT_CH, k=3)

    fwd = jax.jit(functools.partial(deform_conv3d_forward,
                                    k=3, pad=1, dil=1, stride=(1, 1, 1)))
    out = fwd(x, params)
    jax.block_until_ready(out)
    assert out.shape == (B, OUT_CH, T, H, W), out.shape
    assert bool(jnp.all(jnp.isfinite(out.astype(jnp.float32))))
    print("KERNEL_OK")
</pallas_src>

<mosaic_0001>
module attributes {stable_mosaic.version = 11 : i64} {
  func.func @_gemm_epilogue_kernel(%arg0: i32, %arg1: memref<128x36xbf16, #tpu.memory_space<vmem>>, %arg2: memref<36x8xbf16, #tpu.memory_space<vmem>>, %arg3: memref<1x8xf32, #tpu.memory_space<vmem>>, %arg4: memref<128x8xf32, #tpu.memory_space<vmem>>) attributes {dimension_semantics = [#tpu.dimension_semantics<parallel>], iteration_bounds = array<i64: 4>, scalar_prefetch = 0 : i64, scratch_operands = 0 : i64, tpu.core_type = #tpu.core_type<tc>, window_params = [{transform_indices = @transform_0, window_bounds = array<i64: 128, 36>}, {pipeline_mode = #tpu.pipeline_mode<synchronous>, transform_indices = @transform_1, window_bounds = array<i64: 36, 8>}, {pipeline_mode = #tpu.pipeline_mode<synchronous>, transform_indices = @transform_2, window_bounds = array<i64: 1, 8>}, {transform_indices = @transform_3, window_bounds = array<i64: 128, 8>}]} {
    %c0 = arith.constant 0 : index
    %c0_0 = arith.constant 0 : index
    %0 = vector.load %arg1[%c0, %c0_0] : memref<128x36xbf16, #tpu.memory_space<vmem>>, vector<128x36xbf16>
    %c0_1 = arith.constant 0 : index
    %c0_2 = arith.constant 0 : index
    %1 = vector.load %arg2[%c0_1, %c0_2] : memref<36x8xbf16, #tpu.memory_space<vmem>>, vector<36x8xbf16>
    %cst = arith.constant dense<0.000000e+00> : vector<128x8xf32>
    %2 = tpu.matmul %0, %1, %cst {dimension_numbers = #tpu.dot_dimension_numbers<[1], [0], [0], [1], [0, 0, 1, 1], [], []>} : vector<128x36xbf16>, vector<36x8xbf16>, vector<128x8xf32> -> vector<128x8xf32>
    %c0_3 = arith.constant 0 : index
    %c0_4 = arith.constant 0 : index
    %3 = vector.load %arg3[%c0_3, %c0_4] : memref<1x8xf32, #tpu.memory_space<vmem>>, vector<1x8xf32>
    %4 = vector.broadcast %3 : vector<1x8xf32> to vector<128x8xf32>
    %5 = arith.addf %2, %4 : vector<128x8xf32>
    %cst_5 = arith.constant 0.000000e+00 : f32
    %6 = vector.broadcast %cst_5 : f32 to vector<128x8xf32>
    %7 = arith.maximumf %5, %6 : vector<128x8xf32>
    %c0_6 = arith.constant 0 : index
    %c0_7 = arith.constant 0 : index
    %8 = vector.load %arg4[%c0_6, %c0_7] : memref<128x8xf32, #tpu.memory_space<vmem>>, vector<128x8xf32>
    tpu.vector_store %arg4[%c0_6, %c0_7], %7 {strides = array<i32>} : memref<128x8xf32, #tpu.memory_space<vmem>>, vector<128x8xf32>,
    return
  }
  func.func @transform_0(%arg0: i32) -> (i32, i32) {
    %c0_i32 = arith.constant 0 : i32
    %c0_i32_0 = arith.constant 0 : i32
    return %arg0, %c0_i32 : i32, i32
  }
  func.func @transform_1(%arg0: i32) -> (i32, i32) {
    %c0_i32 = arith.constant 0 : i32
    %c0_i32_0 = arith.constant 0 : i32
    %c0_i32_1 = arith.constant 0 : i32
    return %c0_i32, %c0_i32_0 : i32, i32
  }
  func.func @transform_2(%arg0: i32) -> (i32, i32) {
    %c0_i32 = arith.constant 0 : i32
    %c0_i32_0 = arith.constant 0 : i32
    %c0_i32_1 = arith.constant 0 : i32
    return %c0_i32, %c0_i32_0 : i32, i32
  }
  func.func @transform_3(%arg0: i32) -> (i32, i32) {
    %c0_i32 = arith.constant 0 : i32
    %c0_i32_0 = arith.constant 0 : i32
    return %arg0, %c0_i32 : i32, i32
  }
}

</mosaic_0001>

<llo_original>
// kernel: deform_conv3d_forward.1
$region0: #{deform_conv3d_forward.1}
  #allocation0 [shape = 'u32[]', space=smem, size = 0x4, offset = 0x4, fixed_abs, tag = 'smem constant byte address 0x4 - core index']
  #allocation1 [shape = 'u32[72,128]{1,0:T(1,128)}', space=vmem, size = 0x9000, scoped, tag = 'internal scratch']
  %s0 = inlined_call_operand.vmem [shape: bf16[512,36], index: 0, kind: input, shape index: {}]
  %s1 = inlined_call_operand.vmem [shape: bf16[36,8], index: 1, kind: input, shape index: {}]
  %s2 = inlined_call_operand.vmem [shape: f32[1,8], index: 2, kind: input, shape index: {}]
  %s3 = inlined_call_operand.vmem [shape: f32[512,8], index: 3, kind: output, shape index: {}]
  %s4 = sld [smem:[#allocation0]]
  $region45: #{deform_conv3d_forward.1} parent=0
    _
  %s6 = ssub.s32 1, %s4
  %s7 = scalar_select 0, %s6, %s4
  loop: start=0, step=1, limit=6
  $region2: #{deform_conv3d_forward.1} parent=0 // loop_pre_header
    _
  $region3: #{deform_conv3d_forward.1} parent=0 // loop_header
    %s9 = sphi 0, %s13
    %p10 = scmp.ge.s32.totalorder %s9, 6
    %s19 = sphi 0, %s21
    %s22 = sphi 0, %s19
    %s23 = sphi 0, %s22
    %s39 = sphi 0, %s23
    %s43 = sphi 0, %s43
    %s45 = sphi 0, %s43
    %s46 = sphi 0, %s45
    %s60 = sphi 0, %s46
    %s64 = sphi 0, %s64
    %s66 = sphi 0, %s64
    %s67 = sphi 0, %s66
    %s81 = sphi 0, %s67
    %s87 = sphi 0, %s89
    %s90 = sphi 0, %s87
    %s91 = sphi 0, %s90
    %s107 = sphi 0, %s91
  $region4: #{deform_conv3d_forward.1} parent=0 // loop_header_branch
    %12 = sbr.rel (%p10) target = $region8
  $region5: #{deform_conv3d_forward.1} parent=0 // loop_body
    %s14 = ssub.s32 %s9, 1
    %s15 = ssub.s32 %s9, 2
    %s16 = sadd.s32 %s9, 1
    %s17 = ssub.s32 %s9, %s16
    %p18 = scmp.eq.s32.totalorder %s17, 0
    %s20 = sadd.s32 %s19, 1
    %s21 = scalar_select %p18, %s19, %s20
    %p24 = pneg %p18
    %p25 = scmp.eq.s32.totalorder %s9, 3
    %p26 = por %p24, %p25
    %p27 = scmp.ne.s32.totalorder %s19, %s22
    %p28 = scmp.eq.s32.totalorder %s9, 0
    %p29 = por %p27, %p28
    %p30 = scmp.ne.s32.totalorder %s19, %s22
    %p31 = scmp.eq.s32.totalorder %s14, 3
    %p32 = por %p30, %p31
    %p33 = scmp.ne.s32.totalorder %s22, %s23
    %p34 = scmp.eq.s32.totalorder %s14, 0
    %p35 = por %p33, %p34
    %p36 = scmp.ne.s32.totalorder %s22, %s23
    %p37 = scmp.eq.s32.totalorder %s15, 3
    %p38 = por %p36, %p37
    %p40 = scmp.ne.s32.totalorder %s23, %s39
    %p41 = scmp.eq.s32.totalorder %s15, 0
    %p42 = por %p40, %p41
    %s44 = sadd.s32 %s43, 1
    %p47 = scmp.eq.s32.totalorder %s9, 3
    %p48 = scmp.ne.s32.totalorder %s43, %s45
    %p49 = scmp.eq.s32.totalorder %s9, 0
    %p50 = por %p48, %p49
    %p51 = scmp.ne.s32.totalorder %s43, %s45
    %p52 = scmp.eq.s32.totalorder %s14, 3
    %p53 = por %p51, %p52
    %p54 = scmp.ne.s32.totalorder %s45, %s46
    %p55 = scmp.eq.s32.totalorder %s14, 0
    %p56 = por %p54, %p55
    %p57 = scmp.ne.s32.totalorder %s45, %s46
    %p58 = scmp.eq.s32.totalorder %s15, 3
    %p59 = por %p57, %p58
    %p61 = scmp.ne.s32.totalorder %s46, %s60
    %p62 = scmp.eq.s32.totalorder %s15, 0
    %p63 = por %p61, %p62
    %s65 = sadd.s32 %s64, 1
    %p68 = scmp.eq.s32.totalorder %s9, 3
    %p69 = scmp.ne.s32.totalorder %s64, %s66
    %p70 = scmp.eq.s32.totalorder %s9, 0
    %p71 = por %p69, %p70
    %p72 = scmp.ne.s32.totalorder %s64, %s66
    %p73 = scmp.eq.s32.totalorder %s14, 3
    %p74 = por %p72, %p73
    %p75 = scmp.ne.s32.totalorder %s66, %s67
    %p76 = scmp.eq.s32.totalorder %s14, 0
    %p77 = por %p75, %p76
    %p78 = scmp.ne.s32.totalorder %s66, %s67
    %p79 = scmp.eq.s32.totalorder %s15, 3
    %p80 = por %p78, %p79
    %p82 = scmp.ne.s32.totalorder %s67, %s81
    %p83 = scmp.eq.s32.totalorder %s15, 0
    %p84 = por %p82, %p83
    %s85 = ssub.s32 %s9, %s16
    %p86 = scmp.eq.s32.totalorder %s85, 0
    %s88 = sadd.s32 %s87, 1
    %s89 = scalar_select %p86, %s87, %s88
    %p92 = pneg %p86
    %p93 = scmp.eq.s32.totalorder %s9, 3
    %p94 = por %p92, %p93
    %p95 = scmp.ne.s32.totalorder %s87, %s90
    %p96 = scmp.eq.s32.totalorder %s9, 0
    %p97 = por %p95, %p96
    %p98 = scmp.ne.s32.totalorder %s87, %s90
    %p99 = scmp.eq.s32.totalorder %s14, 3
    %p100 = por %p98, %p99
    %p101 = scmp.ne.s32.totalorder %s90, %s91
    %p102 = scmp.eq.s32.totalorder %s14, 0
    %p103 = por %p101, %p102
    %p104 = scmp.ne.s32.totalorder %s90, %s91
    %p105 = scmp.eq.s32.totalorder %s15, 3
    %p106 = por %p104, %p105
    %p108 = scmp.ne.s32.totalorder %s91, %s107
    %p109 = scmp.eq.s32.totalorder %s15, 0
    %p110 = por %p108, %p109
    %p111 = scmp.le.s32.totalorder 1, %s9
    %p112 = scmp.lt.s32.totalorder %s9, 5
    %p113 = pnand %p111, %p112
    %p114 = pneg %p113
    // Predicated region
    $region9: #{deform_conv3d_forward.1} parent=5 // pred_check
      _
    $region10: #{deform_conv3d_forward.1} parent=5 // pred_check_branch
      %116 = sbr.rel (%p113) target = $region12
    $region11: #{deform_conv3d_forward.1} parent=5 // pred_region
      %s117 = ssub.s32 %s9, 1
      // Predicated region
      $region13: #{deform_conv3d_forward.1} parent=11 // pred_check
        %p118 = pneg %p56
      $region14: #{deform_conv3d_forward.1} parent=11 // pred_check_branch
        %120 = sbr.rel (%p118) target = $region16
      $region15: #{deform_conv3d_forward.1} parent=11 // pred_region
        _
      $region16: #{deform_conv3d_forward.1} parent=11 // pred_fallthru
        _
      // Predicated region
      $region17: #{deform_conv3d_forward.1} parent=11 // pred_check
        %p121 = pneg %p77
      $region18: #{deform_conv3d_forward.1} parent=11 // pred_check_branch
        %123 = sbr.rel (%p121) target = $region20
      $region19: #{deform_conv3d_forward.1} parent=11 // pred_region
        _
      $region20: #{deform_conv3d_forward.1} parent=11 // pred_fallthru
        _
    $region12: #{deform_conv3d_forward.1} parent=5 // pred_fallthru
      _
    %p124 = scmp.lt.s32.totalorder %s9, 4
    // Predicated region
    $region21: #{deform_conv3d_forward.1} parent=5 // pred_check
      %p125 = pneg %p124
    $region22: #{deform_conv3d_forward.1} parent=5 // pred_check_branch
      %127 = sbr.rel (%p125) target = $region24
    $region23: #{deform_conv3d_forward.1} parent=5 // pred_region
      // Predicated region
      $region25: #{deform_conv3d_forward.1} parent=23 // pred_check
        %p128 = pneg %p29
      $region26: #{deform_conv3d_forward.1} parent=23 // pred_check_branch
        %130 = sbr.rel (%p128) target = $region28
      $region27: #{deform_conv3d_forward.1} parent=23 // pred_region
        %s131 = smul.u32 16, %s9
        %p132 = scmp.lt.s32.totalorder %s131, 63
        %s133 = scalar_select %p132, %s131, 63
        %s134 = smul.addr %s133, 4
        %s135 = scalar_lea.vmem %s0, %s134
        %s136 = smul.u32 16, %s9
      $region28: #{deform_conv3d_forward.1} parent=23 // pred_fallthru
        _
    $region24: #{deform_conv3d_forward.1} parent=5 // pred_fallthru
      _
    %p137 = scmp.le.s32.totalorder 1, %s9
    %p138 = scmp.lt.s32.totalorder %s9, 5
    %p139 = pnand %p137, %p138
    %p140 = pneg %p139
    // Predicated region
    $region29: #{deform_conv3d_forward.1} parent=5 // pred_check
      _
    $region30: #{deform_conv3d_forward.1} parent=5 // pred_check_branch
      %142 = sbr.rel (%p139) target = $region32
    $region31: #{deform_conv3d_forward.1} parent=5 // pred_region
      %s143 = ssub.s32 %s9, 1
      %s144 = smul.u32 16, %s14
      %p145 = scmp.lt.s32.totalorder %s144, 63
      %s146 = scalar_select %p145, %s144, 63
      %s147 = smul.addr %s146, 4
      %s148 = scalar_lea.vmem %s0, %s147
      %p149 = pneg %p35
      %p150 = pneg %p32
      %p151 = pneg %p56
      %p152 = pneg %p53
      %p153 = pneg %p77
      %p154 = pneg %p74
      %p155 = pneg %p103
      %p156 = pneg %p100
      %s157 = smul.u32 16, %s14
      %p158 = scmp.lt.s32.totalorder %s157, 63
      %s159 = scalar_select %p158, %s157, 63
      %s160 = smul.addr %s159, 8
      %s161 = scalar_lea.vmem %s3, %s160
      %s162 = smul.u32 16, %s14
      %p163 = scmp.lt.s32.totalorder %s162, 63
      %s164 = scalar_select %p163, %s162, 63
      %s165 = smul.addr %s164, 4
      %s166 = scalar_lea.vmem %s0, %s165
      %s167 = smul.u32 16, %s14
      %s168 = smul.u32 16, %s14
      %p169 = scmp.lt.s32.totalorder %s168, 63
      %s170 = scalar_select %p169, %s168, 63
      %s171 = smul.addr %s170, 8
      %s172 = scalar_lea.vmem %s3, %s171
      %s173 = smul.u32 16, %s14
      %v175 = vld [vmem:[%s166] sm:$0xf]
      %v176 = vld [vmem:[%s166 + $0x4] sm:$0xf]
      %v177 = vld [vmem:[%s166 + $0x8] sm:$0xf]
      %v178 = vld [vmem:[%s166 + $0xc] sm:$0xf]
      %v179 = vld [vmem:[%s166 + $0x10] sm:$0xf]
      %v180 = vld [vmem:[%s166 + $0x14] sm:$0xf]
      %v181 = vld [vmem:[%s166 + $0x18] sm:$0xf]
      %v182 = vld [vmem:[%s166 + $0x1c] sm:$0xf]
      %v183 = vld [vmem:[%s166 + $0x20] sm:$0xf]
      %v184 = vld [vmem:[%s166 + $0x24] sm:$0xf]
      %v185 = vld [vmem:[%s166 + $0x28] sm:$0xf]
      %v186 = vld [vmem:[%s166 + $0x2c] sm:$0xf]
      %v187 = vld [vmem:[%s166 + $0x30] sm:$0xf]
      %v188 = vld [vmem:[%s166 + $0x34] sm:$0xf]
      %v189 = vld [vmem:[%s166 + $0x38] sm:$0xf]
      %v190 = vld [vmem:[%s166 + $0x3c] sm:$0xf]
      %v191 = vld [vmem:[%s1] sm:$0xf]
      %v192 = vld [vmem:[%s1 + $0x4] sm:$0xf]
      %v193 = vld [vmem:[%s1 + $0x8] sm:$0xf]
      %v194 = vld [vmem:[%s1 + $0xc] sm:$0xf]
      %v195 = vld [vmem:[%s1 + $0x10] sm:$0x3]
      %v196 = vld [vmem:[%s2] sm:$0x1]
      %v198 = vperm.slane %v196, 0
      %v216 = vunpack.c.l.b16 %v175
      %v217 = vunpack.c.l.b16 %v176
      %v218 = vunpack.c.l.b16 %v177
      %v219 = vunpack.c.l.b16 %v178
      %v220 = vunpack.c.l.b16 %v179
      %v221 = vunpack.c.l.b16 %v180
      %v222 = vunpack.c.l.b16 %v181
      %v223 = vunpack.c.l.b16 %v182
      %v224 = vunpack.c.l.b16 %v183
      %v225 = vunpack.c.l.b16 %v184
      %v226 = vunpack.c.l.b16 %v185
      %v227 = vunpack.c.l.b16 %v186
      %v228 = vunpack.c.l.b16 %v187
      %v229 = vunpack.c.l.b16 %v188
      %v230 = vunpack.c.l.b16 %v189
      %v231 = vunpack.c.l.b16 %v190
      %v232 = vpack.c.b16 %v217, %v216
      %v233 = vpack.c.b16 %v219, %v218
      %v234 = vpack.c.b16 %v221, %v220
      %v235 = vpack.c.b16 %v223, %v222
      %v236 = vpack.c.b16 %v225, %v224
      %v237 = vpack.c.b16 %v227, %v226
      %v238 = vpack.c.b16 %v229, %v228
      %v239 = vpack.c.b16 %v231, %v230
      %v245 = vunpack.c.l.b16 %v191
      %v246 = vunpack.c.l.b16 %v192
      %v247 = vunpack.c.l.b16 %v193
      %v248 = vunpack.c.l.b16 %v194
      %v249 = vunpack.c.l.b16 %v195
      %v250 = vpack.c.b16 %v246, %v245
      %v251 = vpack.c.b16 %v248, %v247
      %v252 = vpack.c.b16 %v249, %v249
      %vm255 = vcmask 293888
      %v257 = vsel %vm255, %v232, 0
      %v260 = vsel %vm255, %v233, 0
      %v263 = vsel %vm255, %v234, 0
      %v266 = vsel %vm255, %v235, 0
      %v269 = vsel %vm255, %v236, 0
      %v272 = vsel %vm255, %v237, 0
      %v275 = vsel %vm255, %v238, 0
      %v278 = vsel %vm255, %v239, 0
      %vm280 = vcmask 1041408
      %v282 = vsel %vm280, %v252, 0
      %284 = vmatpush.bf16.msra.mxu0 0
      %285 = vmatpush.bf16.msra.mxu0 0
      %286 = vmatpush.bf16.msra.mxu0 0
      %287 = vmatpush.bf16.msra.mxu0 0
      %288 = vmatpush.bf16.msra.mxu0 0
      %289 = vmatpush.bf16.msra.mxu0 %v282
      %290 = vmatpush.bf16.msra.mxu0 %v251
      %291 = vmatpush.bf16.msra.mxu0 %v250
      %292 = vmatmul.bf16.gmra.mxu0 %v257
      %v293 = vpop.f32.mrf.mxu0
      %v294 = vadd.f32 %v198, %v293
      %v295 = vpop.f32.mrf.mxu0
      %v296 = vadd.f32 %v198, %v295
      %297 = vmatmul.bf16.gmra.mxu0 %v260
      %v298 = vpop.f32.mrf.mxu0
      %v299 = vadd.f32 %v198, %v298
      %v300 = vpop.f32.mrf.mxu0
      %v301 = vadd.f32 %v198, %v300
      %302 = vmatmul.bf16.gmra.mxu0 %v263
      %v303 = vpop.f32.mrf.mxu0
      %v304 = vadd.f32 %v198, %v303
      %v305 = vpop.f32.mrf.mxu0
      %v306 = vadd.f32 %v198, %v305
      %307 = vmatmul.bf16.gmra.mxu0 %v266
      %v308 = vpop.f32.mrf.mxu0
      %v309 = vadd.f32 %v198, %v308
      %v310 = vpop.f32.mrf.mxu0
      %v311 = vadd.f32 %v198, %v310
      %312 = vmatmul.bf16.gmra.mxu0 %v269
      %v313 = vpop.f32.mrf.mxu0
      %v314 = vadd.f32 %v198, %v313
      %v315 = vpop.f32.mrf.mxu0
      %v316 = vadd.f32 %v198, %v315
      %317 = vmatmul.bf16.gmra.mxu0 %v272
      %v318 = vpop.f32.mrf.mxu0
      %v319 = vadd.f32 %v198, %v318
      %v320 = vpop.f32.mrf.mxu0
      %v321 = vadd.f32 %v198, %v320
      %322 = vmatmul.bf16.gmra.mxu0 %v275
      %v323 = vpop.f32.mrf.mxu0
      %v324 = vadd.f32 %v198, %v323
      %v325 = vpop.f32.mrf.mxu0
      %v326 = vadd.f32 %v198, %v325
      %327 = vmatmul.bf16.gmra.mxu0 %v278
      %v328 = vpop.f32.mrf.mxu0
      %v329 = vadd.f32 %v198, %v328
      %v330 = vpop.f32.mrf.mxu0
      %v331 = vadd.f32 %v198, %v330
      %332 = vdwg.mxu0
      %v333 = vmax.f32 %v294, 0.0
      %v334 = vmax.f32 %v296, 0.0
      %v335 = vmax.f32 %v299, 0.0
      %v336 = vmax.f32 %v301, 0.0
      %v337 = vmax.f32 %v304, 0.0
      %v338 = vmax.f32 %v306, 0.0
      %v339 = vmax.f32 %v309, 0.0
      %v340 = vmax.f32 %v311, 0.0
      %v341 = vmax.f32 %v314, 0.0
      %v342 = vmax.f32 %v316, 0.0
      %v343 = vmax.f32 %v319, 0.0
      %v344 = vmax.f32 %v321, 0.0
      %v345 = vmax.f32 %v324, 0.0
      %v346 = vmax.f32 %v326, 0.0
      %v347 = vmax.f32 %v329, 0.0
      %v348 = vmax.f32 %v331, 0.0
      %vm349 = vcmask 64512
      %350 = vst.msk [vmem:[%s172] sm:$0xff] %vm349, %v333
      %351 = vst.msk [vmem:[%s172 + $0x8] sm:$0xff] %vm349, %v334
      %352 = vst.msk [vmem:[%s172 + $0x10] sm:$0xff] %vm349, %v335
      %353 = vst.msk [vmem:[%s172 + $0x18] sm:$0xff] %vm349, %v336
      %354 = vst.msk [vmem:[%s172 + $0x20] sm:$0xff] %vm349, %v337
      %355 = vst.msk [vmem:[%s172 + $0x28] sm:$0xff] %vm349, %v338
      %356 = vst.msk [vmem:[%s172 + $0x30] sm:$0xff] %vm349, %v339
      %357 = vst.msk [vmem:[%s172 + $0x38] sm:$0xff] %vm349, %v340
      %358 = vst.msk [vmem:[%s172 + $0x40] sm:$0xff] %vm349, %v341
      %359 = vst.msk [vmem:[%s172 + $0x48] sm:$0xff] %vm349, %v342
      %360 = vst.msk [vmem:[%s172 + $0x50] sm:$0xff] %vm349, %v343
      %361 = vst.msk [vmem:[%s172 + $0x58] sm:$0xff] %vm349, %v344
      %362 = vst.msk [vmem:[%s172 + $0x60] sm:$0xff] %vm349, %v345
      %363 = vst.msk [vmem:[%s172 + $0x68] sm:$0xff] %vm349, %v346
      %364 = vst.msk [vmem:[%s172 + $0x70] sm:$0xff] %vm349, %v347
      %365 = vst.msk [vmem:[%s172 + $0x78] sm:$0xff] %vm349, %v348
      %s366 = smul.u32 16, %s14
      %p367 = scmp.lt.s32.totalorder %s366, 63
      %s368 = scalar_select %p367, %s366, 63
      %s369 = smul.addr %s368, 8
      %s370 = scalar_lea.vmem %s3, %s369
      // Predicated region
      $region33: #{deform_conv3d_forward.1} parent=31 // pred_check
        %p371 = pneg %p100
      $region34: #{deform_conv3d_forward.1} parent=31 // pred_check_branch
        %373 = sbr.rel (%p371) target = $region36
      $region35: #{deform_conv3d_forward.1} parent=31 // pred_region
        %s374 = smul.u32 16, %s14
      $region36: #{deform_conv3d_forward.1} parent=31 // pred_fallthru
        _
    $region32: #{deform_conv3d_forward.1} parent=5 // pred_fallthru
      _
    %p375 = scmp.le.s32.totalorder 2, %s9
    // Predicated region
    $region37: #{deform_conv3d_forward.1} parent=5 // pred_check
      %p376 = pneg %p375
    $region38: #{deform_conv3d_forward.1} parent=5 // pred_check_branch
      %378 = sbr.rel (%p376) target = $region40
    $region39: #{deform_conv3d_forward.1} parent=5 // pred_region
      %s379 = ssub.s32 %s9, 2
      // Predicated region
      $region41: #{deform_conv3d_forward.1} parent=39 // pred_check
        %p380 = pneg %p106
      $region42: #{deform_conv3d_forward.1} parent=39 // pred_check_branch
        %382 = sbr.rel (%p380) target = $region44
      $region43: #{deform_conv3d_forward.1} parent=39 // pred_region
        %s383 = smul.u32 16, %s15
        %p384 = scmp.lt.s32.totalorder %s383, 63
        %s385 = scalar_select %p384, %s383, 63
        %s386 = smul.addr %s385, 8
        %s387 = scalar_lea.vmem %s3, %s386
      $region44: #{deform_conv3d_forward.1} parent=39 // pred_fallthru
        _
    $region40: #{deform_conv3d_forward.1} parent=5 // pred_fallthru
      _
  $region6: #{deform_conv3d_forward.1} parent=0 // loop_footer
    %s13 = sadd.s32 1, %s9
  $region7: #{deform_conv3d_forward.1} parent=0 // loop_footer_branch
    %8 = sbr.rel target = $region3
  $region8: #{deform_conv3d_forward.1} parent=0 // loop_exit
    _

</llo_original>
